<compile_context>
chip_gen: v7x
topology: tpu7x:2x2x1
jax: 0.10.0
libtpu: 0.0.40
codegen_flags: <defaults>
</compile_context>

<pallas_src>
import functools

import jax
import jax.numpy as jnp
from jax.experimental import pallas as pl
from jax.experimental.pallas import tpu as pltpu


NUM_TASKS = 10
NUM_LAYERS = 3
INPUT_DIM = NUM_TASKS + NUM_LAYERS          # 13 (one-hot task ++ one-hot layer)
HIDDEN_DIM = INPUT_DIM * 2                  # 26 (module spec: hidden_dim = input_dim * 2)

# Target ("main") network the hypernet emits parameters for.
TGT_IN, TGT_HID, TGT_OUT = 4, 8, 2
W_DIMS = (TGT_IN * TGT_HID, TGT_HID * TGT_HID, TGT_HID * TGT_OUT)   # (32, 64, 16)
B_DIMS = (TGT_HID, TGT_HID, TGT_OUT)                                # (8, 8, 2)

PAD = 128                                   # lane-dense width per layer (>= max(w+b)=72)
WIDE = NUM_LAYERS * PAD                     # 384: all three layers' heads side by side
assert max(w + b for w, b in zip(W_DIMS, B_DIMS)) <= PAD


def _leaky_relu(v, slope=0.01):
    return jnp.where(v >= 0, v, slope * v)


# ----------------------------------------------------------------------------
# Kernels
# ----------------------------------------------------------------------------

def _fused_kernel(task_ref, layer_base_ref, wc1_ref, bc1_ref, wc2_ref, bc2_ref,
                  wh_ref, bh_ref, out_ref):
    """All 3 layers of generate_weights_bias in one shot.

    task_ref      : SMEM (1,) int32 task index
    layer_base_ref: (3, 13) constant layer one-hot part (cols 10..12)
    wc1/bc1       : (13, 26) / (1, 26)   shared trunk layer 1 (pre-transposed)
    wc2/bc2       : (26, 26) / (1, 26)   shared trunk layer 2
    wh_ref        : (26, 384)   [W-head_0|b-head_0|pad | W-head_1|... ] packed heads
    bh_ref        : (1, 384)    packed head biases
    out_ref       : (3, 384)    row i, cols [i*128, i*128+w+b) hold layer i's [W|b]
    """
    t = task_ref[0]
    col = jax.lax.broadcasted_iota(jnp.int32, (NUM_LAYERS, INPUT_DIM), 1)
    task_onehot = jnp.where(col == t, 1.0, 0.0).astype(jnp.float32)
    x = layer_base_ref[...] + task_onehot                              # (3, 13) one-hots
    h = _leaky_relu(jnp.dot(x, wc1_ref[...], preferred_element_type=jnp.float32)
                    + bc1_ref[...])                                    # (3, 26)
    h = _leaky_relu(jnp.dot(h, wc2_ref[...], preferred_element_type=jnp.float32)
                    + bc2_ref[...])                                    # (3, 26)
    out_ref[...] = _leaky_relu(
        jnp.dot(h, wh_ref[...], preferred_element_type=jnp.float32)
        + bh_ref[...])                                                 # (3, 384), one store


def _layer_kernel(x_ref, wc1_ref, bc1_ref, wc2_ref, bc2_ref, wh_ref, bh_ref, out_ref):
    """Single-layer forward (arbitrary batch), combined+padded head -> (B, 128)."""
    x = x_ref[...]
    h = _leaky_relu(jnp.dot(x, wc1_ref[...], preferred_element_type=jnp.float32)
                    + bc1_ref[...])
    h = _leaky_relu(jnp.dot(h, wc2_ref[...], preferred_element_type=jnp.float32)
                    + bc2_ref[...])
    out_ref[...] = _leaky_relu(
        jnp.dot(h, wh_ref[...], preferred_element_type=jnp.float32) + bh_ref[...])


# ----------------------------------------------------------------------------
# pallas_call builders (one compiled variant per batch size; fused path is fixed)
# ----------------------------------------------------------------------------

_VMEM = pl.BlockSpec(memory_space=pltpu.MemorySpace.VMEM)
_SMEM = pl.BlockSpec(memory_space=pltpu.MemorySpace.SMEM)


def _cost(batch, head_cols):
    flops = 2 * batch * (INPUT_DIM * HIDDEN_DIM + HIDDEN_DIM * HIDDEN_DIM
                         + HIDDEN_DIM * head_cols)
    bytes_accessed = 4 * (batch * INPUT_DIM
                          + INPUT_DIM * HIDDEN_DIM + HIDDEN_DIM
                          + HIDDEN_DIM * HIDDEN_DIM + HIDDEN_DIM
                          + HIDDEN_DIM * head_cols + head_cols
                          + batch * head_cols)
    return pl.CostEstimate(flops=flops, transcendentals=0,
                           bytes_accessed=bytes_accessed)


@functools.lru_cache(maxsize=None)
def _build_fused_call():
    return pl.pallas_call(
        _fused_kernel,
        out_shape=jax.ShapeDtypeStruct((NUM_LAYERS, WIDE), jnp.float32),
        in_specs=[_SMEM, _VMEM, _VMEM, _VMEM, _VMEM, _VMEM, _VMEM, _VMEM],
        out_specs=_VMEM,
        cost_estimate=_cost(NUM_LAYERS, WIDE),
    )


@functools.lru_cache(maxsize=None)
def _build_layer_call(batch):
    return pl.pallas_call(
        _layer_kernel,
        out_shape=jax.ShapeDtypeStruct((batch, PAD), jnp.float32),
        in_specs=[_VMEM] * 7,
        out_specs=_VMEM,
        cost_estimate=_cost(batch, PAD),
    )


# ----------------------------------------------------------------------------
# Jitted wrappers (one compiled dispatch each)
# ----------------------------------------------------------------------------

@functools.partial(jax.jit, static_argnames=("w_dim", "b_dim"))
def _forward_impl(X, wc1, bc1, wc2, bc2, wh, bh, *, w_dim, b_dim):
    out = _build_layer_call(X.shape[0])(X, wc1, bc1, wc2, bc2, wh, bh)
    return out[:, :w_dim], out[:, w_dim:w_dim + b_dim]


@functools.partial(jax.jit, static_argnames=("w_dims", "b_dims"))
def _generate_impl(task_index, layer_base, wc1, bc1, wc2, bc2, wh_all, bh_all,
                   *, w_dims, b_dims):
    task_arr = jnp.asarray(task_index, jnp.int32).reshape(1)
    out = _build_fused_call()(task_arr, layer_base,
                              wc1, bc1, wc2, bc2, wh_all, bh_all)       # (3, 384)
    weights = tuple(out[i:i + 1, i * PAD:i * PAD + w_dims[i]]
                    for i in range(NUM_LAYERS))
    biases = tuple(out[i:i + 1, i * PAD + w_dims[i]:i * PAD + w_dims[i] + b_dims[i]]
                   for i in range(NUM_LAYERS))
    return weights, biases


# ----------------------------------------------------------------------------
# Module
# ----------------------------------------------------------------------------

def _linear_init(key, out_dim, in_dim):
    """Deterministic init mimicking nn.Linear default (uniform +/- 1/sqrt(fan_in))."""
    kw, kb = jax.random.split(key)
    bound = 1.0 / jnp.sqrt(jnp.float32(in_dim))
    w = jax.random.uniform(kw, (out_dim, in_dim), jnp.float32, -bound, bound)
    b = jax.random.uniform(kb, (out_dim,), jnp.float32, -bound, bound)
    return w, b


class Hypernet:
    """JAX/Pallas re-implementation of the PyTorch Hypernet module."""

    def __init__(self, key, input_dim, hidden_dim, w1_dim, b1_dim,
                 w2_dim, b2_dim, w3_dim, b3_dim):
        keys = jax.random.split(key, 8)
        self.w_dims = (w1_dim, w2_dim, w3_dim)
        self.b_dims = (b1_dim, b2_dim, b3_dim)

        # Trunk: store pre-transposed (in, out) weights and (1, out) biases.
        wc1, bc1 = _linear_init(keys[0], hidden_dim, input_dim)
        wc2, bc2 = _linear_init(keys[1], hidden_dim, hidden_dim)
        self.wc1, self.bc1 = wc1.T, bc1.reshape(1, -1)
        self.wc2, self.bc2 = wc2.T, bc2.reshape(1, -1)

        # Constant layer-id one-hot base for the fused kernel: (3, 13),
        # row i has a 1 at column NUM_TASKS + i.
        layer_base = jnp.zeros((NUM_LAYERS, input_dim), jnp.float32)
        self.layer_base = layer_base.at[jnp.arange(NUM_LAYERS),
                                        NUM_TASKS + jnp.arange(NUM_LAYERS)].set(1.0)

        # Heads (raw, transposed) kept for the pure-JAX reference check.
        self._weight_heads = []   # (hidden, w_dim), (1, w_dim)
        self._bias_heads = []     # (hidden, b_dim), (1, b_dim)
        wh_all = jnp.zeros((hidden_dim, WIDE), jnp.float32)
        bh_all = jnp.zeros((1, WIDE), jnp.float32)
        head_keys = [(keys[2], keys[3]), (keys[4], keys[5]), (keys[6], keys[7])]
        for i, (kw, kb) in enumerate(head_keys):
            ww, wb = _linear_init(kw, self.w_dims[i], hidden_dim)
            bw, bb = _linear_init(kb, self.b_dims[i], hidden_dim)
            ww_t, wb_r = ww.T, wb.reshape(1, -1)
            bw_t, bb_r = bw.T, bb.reshape(1, -1)
            self._weight_heads.append((ww_t, wb_r))
            self._bias_heads.append((bw_t, bb_r))
            base = i * PAD
            wh_all = wh_all.at[:, base:base + self.w_dims[i]].set(ww_t)
            wh_all = wh_all.at[:, base + self.w_dims[i]:
                                  base + self.w_dims[i] + self.b_dims[i]].set(bw_t)
            bh_all = bh_all.at[:, base:base + self.w_dims[i]].set(wb_r)
            bh_all = bh_all.at[:, base + self.w_dims[i]:
                                  base + self.w_dims[i] + self.b_dims[i]].set(bb_r)
        self.wh_all = wh_all                                   # (hidden, 384)
        self.bh_all = bh_all                                   # (1, 384)
        # Per-layer combined [weight|bias|pad] heads for the forward() path.
        self.comb_w = [wh_all[:, i * PAD:(i + 1) * PAD] for i in range(NUM_LAYERS)]
        self.comb_b = [bh_all[:, i * PAD:(i + 1) * PAD] for i in range(NUM_LAYERS)]

    def forward(self, X, layer_no):
        X = jnp.asarray(X, jnp.float32)
        if X.ndim == 1:
            X = X.reshape(1, -1)
        return _forward_impl(
            X, self.wc1, self.bc1, self.wc2, self.bc2,
            self.comb_w[layer_no], self.comb_b[layer_no],
            w_dim=self.w_dims[layer_no], b_dim=self.b_dims[layer_no])

    def generate_weights_bias(self, task_index, num_layers):
        assert num_layers == NUM_LAYERS, "fused kernel is specialized to 3 layers"
        weights, biases = _generate_impl(
            task_index, self.layer_base,
            self.wc1, self.bc1, self.wc2, self.bc2,
            self.wh_all, self.bh_all,
            w_dims=self.w_dims, b_dims=self.b_dims)
        return list(weights), list(biases)


# ----------------------------------------------------------------------------
# Pure-JAX reference (for correctness checking)
# ----------------------------------------------------------------------------

def _reference_forward(net, X, layer_no):
    h = _leaky_relu(X @ net.wc1 + net.bc1)
    h = _leaky_relu(h @ net.wc2 + net.bc2)
    ww, wb = net._weight_heads[layer_no]
    bw, bb = net._bias_heads[layer_no]
    return _leaky_relu(h @ ww + wb), _leaky_relu(h @ bw + bb)


if __name__ == "__main__":
    key = jax.random.PRNGKey(0)
    net = Hypernet(
        key, INPUT_DIM, HIDDEN_DIM,
        W_DIMS[0], B_DIMS[0], W_DIMS[1], B_DIMS[1], W_DIMS[2], B_DIMS[2],
    )

    # --- fused generate_weights_bias path (one pallas_call for all 3 layers) ---
    task_index = 0
    weights, biases = net.generate_weights_bias(task_index, NUM_LAYERS)
    for w, b in zip(weights, biases):
        jax.block_until_ready(w)
        jax.block_until_ready(b)

    assert [tuple(w.shape) for w in weights] == [(1, d) for d in W_DIMS]
    assert [tuple(b.shape) for b in biases] == [(1, d) for d in B_DIMS]

    # Check every layer against the pure-JAX reference.
    task_id = jax.nn.one_hot(task_index, NUM_TASKS, dtype=jnp.float32)
    for i in range(NUM_LAYERS):
        layer_id = jax.nn.one_hot(i, NUM_LAYERS, dtype=jnp.float32)
        X = jnp.concatenate([task_id, layer_id]).reshape(1, -1)
        ref_w, ref_b = _reference_forward(net, X, i)
        assert jnp.allclose(weights[i], ref_w, atol=1e-5), f"layer {i}: W mismatch"
        assert jnp.allclose(biases[i], ref_b, atol=1e-5), f"layer {i}: b mismatch"

    # --- single-layer forward path with a small batch ---
    Xb = jax.random.uniform(jax.random.PRNGKey(1), (2, INPUT_DIM), jnp.float32)
    for layer_no in range(NUM_LAYERS):
        ker_w, ker_b = net.forward(Xb, layer_no)
        jax.block_until_ready(ker_w)
        ref_w, ref_b = _reference_forward(net, Xb, layer_no)
        assert ker_w.shape == (2, W_DIMS[layer_no])
        assert ker_b.shape == (2, B_DIMS[layer_no])
        assert jnp.allclose(ker_w, ref_w, atol=1e-5), f"forward W mismatch L{layer_no}"
        assert jnp.allclose(ker_b, ref_b, atol=1e-5), f"forward b mismatch L{layer_no}"

    print("KERNEL_OK")
</pallas_src>

<mosaic_0001>
module attributes {stable_mosaic.version = 11 : i64} {
  func.func @_fused_kernel(%arg0: memref<1xi32, #tpu.memory_space<smem>>, %arg1: memref<3x13xf32, #tpu.memory_space<vmem>>, %arg2: memref<13x26xf32, #tpu.memory_space<vmem>>, %arg3: memref<1x26xf32, #tpu.memory_space<vmem>>, %arg4: memref<26x26xf32, #tpu.memory_space<vmem>>, %arg5: memref<1x26xf32, #tpu.memory_space<vmem>>, %arg6: memref<26x384xf32, #tpu.memory_space<vmem>>, %arg7: memref<1x384xf32, #tpu.memory_space<vmem>>, %arg8: memref<3x384xf32, #tpu.memory_space<vmem>>) attributes {dimension_semantics = [], scalar_prefetch = 0 : i64, scratch_operands = 0 : i64, tpu.core_type = #tpu.core_type<tc>} {
    %c0 = arith.constant 0 : index
    %0 = memref.load %arg0[%c0] : memref<1xi32, #tpu.memory_space<smem>>
    %1 = tpu.iota {dimensions = array<i32: 1>} : vector<3x13xi32>
    %2 = vector.broadcast %0 : i32 to vector<3x13xi32>
    %3 = arith.cmpi eq, %1, %2 : vector<3x13xi32>
    %cst = arith.constant 1.000000e+00 : f32
    %cst_0 = arith.constant 0.000000e+00 : f32
    %4 = vector.broadcast %cst : f32 to vector<3x13xf32>
    %5 = vector.broadcast %cst_0 : f32 to vector<3x13xf32>
    %6 = arith.select %3, %4, %5 : vector<3x13xi1>, vector<3x13xf32>
    %c0_1 = arith.constant 0 : index
    %c0_2 = arith.constant 0 : index
    %7 = vector.load %arg1[%c0_1, %c0_2] : memref<3x13xf32, #tpu.memory_space<vmem>>, vector<3x13xf32>
    %8 = arith.addf %7, %6 : vector<3x13xf32>
    %c0_3 = arith.constant 0 : index
    %c0_4 = arith.constant 0 : index
    %9 = vector.load %arg2[%c0_3, %c0_4] : memref<13x26xf32, #tpu.memory_space<vmem>>, vector<13x26xf32>
    %cst_5 = arith.constant dense<0.000000e+00> : vector<3x26xf32>
    %10 = tpu.matmul %8, %9, %cst_5 {dimension_numbers = #tpu.dot_dimension_numbers<[1], [0], [0], [1], [0, 0, 1, 1], [], []>} : vector<3x13xf32>, vector<13x26xf32>, vector<3x26xf32> -> vector<3x26xf32>
    %c0_6 = arith.constant 0 : index
    %c0_7 = arith.constant 0 : index
    %11 = vector.load %arg3[%c0_6, %c0_7] : memref<1x26xf32, #tpu.memory_space<vmem>>, vector<1x26xf32>
    %12 = vector.broadcast %11 : vector<1x26xf32> to vector<3x26xf32>
    %13 = arith.addf %10, %12 : vector<3x26xf32>
    %cst_8 = arith.constant 0.000000e+00 : f32
    %14 = vector.broadcast %cst_8 : f32 to vector<3x26xf32>
    %15 = arith.cmpf oge, %13, %14 : vector<3x26xf32>
    %cst_9 = arith.constant 0.00999999977 : f32
    %16 = vector.broadcast %cst_9 : f32 to vector<3x26xf32>
    %17 = arith.mulf %16, %13 : vector<3x26xf32>
    %18 = arith.select %15, %13, %17 : vector<3x26xi1>, vector<3x26xf32>
    %c0_10 = arith.constant 0 : index
    %c0_11 = arith.constant 0 : index
    %19 = vector.load %arg4[%c0_10, %c0_11] : memref<26x26xf32, #tpu.memory_space<vmem>>, vector<26x26xf32>
    %cst_12 = arith.constant dense<0.000000e+00> : vector<3x26xf32>
    %20 = tpu.matmul %18, %19, %cst_12 {dimension_numbers = #tpu.dot_dimension_numbers<[1], [0], [0], [1], [0, 0, 1, 1], [], []>} : vector<3x26xf32>, vector<26x26xf32>, vector<3x26xf32> -> vector<3x26xf32>
    %c0_13 = arith.constant 0 : index
    %c0_14 = arith.constant 0 : index
    %21 = vector.load %arg5[%c0_13, %c0_14] : memref<1x26xf32, #tpu.memory_space<vmem>>, vector<1x26xf32>
    %22 = vector.broadcast %21 : vector<1x26xf32> to vector<3x26xf32>
    %23 = arith.addf %20, %22 : vector<3x26xf32>
    %cst_15 = arith.constant 0.000000e+00 : f32
    %24 = vector.broadcast %cst_15 : f32 to vector<3x26xf32>
    %25 = arith.cmpf oge, %23, %24 : vector<3x26xf32>
    %cst_16 = arith.constant 0.00999999977 : f32
    %26 = vector.broadcast %cst_16 : f32 to vector<3x26xf32>
    %27 = arith.mulf %26, %23 : vector<3x26xf32>
    %28 = arith.select %25, %23, %27 : vector<3x26xi1>, vector<3x26xf32>
    %c0_17 = arith.constant 0 : index
    %c0_18 = arith.constant 0 : index
    %29 = vector.load %arg6[%c0_17, %c0_18] : memref<26x384xf32, #tpu.memory_space<vmem>>, vector<26x384xf32>
    %cst_19 = arith.constant dense<0.000000e+00> : vector<3x384xf32>
    %30 = tpu.matmul %28, %29, %cst_19 {dimension_numbers = #tpu.dot_dimension_numbers<[1], [0], [0], [1], [0, 0, 1, 1], [], []>} : vector<3x26xf32>, vector<26x384xf32>, vector<3x384xf32> -> vector<3x384xf32>
    %c0_20 = arith.constant 0 : index
    %c0_21 = arith.constant 0 : index
    %31 = vector.load %arg7[%c0_20, %c0_21] : memref<1x384xf32, #tpu.memory_space<vmem>>, vector<1x384xf32>
    %32 = vector.broadcast %31 : vector<1x384xf32> to vector<3x384xf32>
    %33 = arith.addf %30, %32 : vector<3x384xf32>
    %cst_22 = arith.constant 0.000000e+00 : f32
    %34 = vector.broadcast %cst_22 : f32 to vector<3x384xf32>
    %35 = arith.cmpf oge, %33, %34 : vector<3x384xf32>
    %cst_23 = arith.constant 0.00999999977 : f32
    %36 = vector.broadcast %cst_23 : f32 to vector<3x384xf32>
    %37 = arith.mulf %36, %33 : vector<3x384xf32>
    %38 = arith.select %35, %33, %37 : vector<3x384xi1>, vector<3x384xf32>
    %c0_24 = arith.constant 0 : index
    %c0_25 = arith.constant 0 : index
    %39 = vector.load %arg8[%c0_24, %c0_25] : memref<3x384xf32, #tpu.memory_space<vmem>>, vector<3x384xf32>
    tpu.vector_store %arg8[%c0_24, %c0_25], %38 {strides = array<i32>} : memref<3x384xf32, #tpu.memory_space<vmem>>, vector<3x384xf32>,
    return
  }
}

</mosaic_0001>

<llo_original>
// kernel: _generate_impl.1
$region0: #{_generate_impl.1}
  #allocation0 [shape = 'u32[]', space=smem, size = 0x4, offset = 0x4, fixed_abs, tag = 'smem constant byte address 0x4 - core index']
  #allocation1 [shape = 'u32[144,128]{1,0:T(1,128)}', space=vmem, size = 0x12000, scoped, tag = 'internal scratch']
  #allocation2 [shape = 's32[1]{0:T(128)S(6)}', space=smem, size = 0x200, scoped, tag = 'scoped memory for _generate_impl.1']
  %s0 = inlined_call_operand.<no memory space> [shape: s32[1], index: 0, kind: input, shape index: {}]
  %s1 = inlined_call_operand.vmem [shape: f32[3,13], index: 1, kind: input, shape index: {}]
  %s2 = inlined_call_operand.hbm [shape: f32[13,26], index: 2, kind: input, shape index: {}]
  %s3 = inlined_call_operand.vmem [shape: f32[1,26], index: 3, kind: input, shape index: {}]
  %s4 = inlined_call_operand.hbm [shape: f32[26,26], index: 4, kind: input, shape index: {}]
  %s5 = inlined_call_operand.vmem [shape: f32[1,26], index: 5, kind: input, shape index: {}]
  %s6 = inlined_call_operand.hbm [shape: f32[26,384], index: 6, kind: input, shape index: {}]
  %s7 = inlined_call_operand.vmem [shape: f32[1,384], index: 7, kind: input, shape index: {}]
  %s8 = inlined_call_operand.vmem [shape: f32[3,384], index: 8, kind: output, shape index: {}]
  %s9 = sld [smem:[#allocation0]]
  $region54: #{_generate_impl.1} parent=0
    _
  %s11 = ssub.s32 1, %s9
  %s12 = scalar_select 0, %s11, %s9
  %13 = sst [smem:[#allocation2]] %s0
  $region1: #{_generate_impl.1} parent=0
    #allocation3 [shape = 'u8[8192]{0}', space=vmem, size = 0x2000, scoped, tag = 'input window, operand 2, single buffered']
    #allocation4 [shape = 's32[1]{0}', space=sflag, size = 0x4, scoped, tag = 'scoped memory for _generate_impl.1']
    #allocation5 [shape = 'u8[16384]{0}', space=vmem, size = 0x4000, scoped, tag = 'input window, operand 4, single buffered']
    #allocation6 [shape = 's32[1]{0}', space=sflag, size = 0x4, scoped, tag = 'scoped memory for _generate_impl.1']
    #allocation7 [shape = 'u8[49152]{0}', space=vmem, size = 0xc000, scoped, tag = 'input window, operand 6, single buffered']
    %14 = vsyncpa [#allocation4], 0
    %15 = vsyncpa [#allocation6], 0
    // Predicated region
    $region2: #{_generate_impl.1} parent=1 // pred_check
      _
    $region3: #{_generate_impl.1} parent=1 // pred_check_branch
      %17 = sbr.rel (0) target = $region5
    $region4: #{_generate_impl.1} parent=1 // pred_region
      _
    $region5: #{_generate_impl.1} parent=1 // pred_fallthru
      _
    // Predicated region
    $region6: #{_generate_impl.1} parent=1 // pred_check
      _
    $region7: #{_generate_impl.1} parent=1 // pred_check_branch
      %19 = sbr.rel (0) target = $region9
    $region8: #{_generate_impl.1} parent=1 // pred_region
      _
    $region9: #{_generate_impl.1} parent=1 // pred_fallthru
      _
    // Predicated region
    $region10: #{_generate_impl.1} parent=1 // pred_check
      _
    $region11: #{_generate_impl.1} parent=1 // pred_check_branch
      %21 = sbr.rel (0) target = $region13
    $region12: #{_generate_impl.1} parent=1 // pred_region
      %s23 = ssub.s32 256, 256
      %24 = vsyncadd [#allocation4], %s23
      %s25 = sshll.u32 [#allocation3], 4
      %s26 = int_to_ptr.vmem [resolvable:$true] %s25
      %31 = dma.hbm_to_vmem [thread:$0]  %s2, 256, %s26, [#allocation4], 128, 128, 8
    $region13: #{_generate_impl.1} parent=1 // pred_fallthru
      _
    // Predicated region
    $region14: #{_generate_impl.1} parent=1 // pred_check
      _
    $region15: #{_generate_impl.1} parent=1 // pred_check_branch
      %33 = sbr.rel (0) target = $region17
    $region16: #{_generate_impl.1} parent=1 // pred_region
      _
    $region17: #{_generate_impl.1} parent=1 // pred_fallthru
      _
    // Predicated region
    $region18: #{_generate_impl.1} parent=1 // pred_check
      _
    $region19: #{_generate_impl.1} parent=1 // pred_check_branch
      %35 = sbr.rel (0) target = $region21
    $region20: #{_generate_impl.1} parent=1 // pred_region
      %s37 = ssub.s32 512, 512
      %38 = vsyncadd [#allocation6], %s37
      %s39 = sshll.u32 [#allocation5], 4
      %s40 = int_to_ptr.vmem [resolvable:$true] %s39
      %45 = dma.hbm_to_vmem [thread:$0]  %s4, 512, %s40, [#allocation6], 128, 128, 8
    $region21: #{_generate_impl.1} parent=1 // pred_fallthru
      _
    // Predicated region
    $region22: #{_generate_impl.1} parent=1 // pred_check
      _
    $region23: #{_generate_impl.1} parent=1 // pred_check_branch
      %47 = sbr.rel (0) target = $region25
    $region24: #{_generate_impl.1} parent=1 // pred_region
      _
    $region25: #{_generate_impl.1} parent=1 // pred_fallthru
      _
    // Predicated region
    $region26: #{_generate_impl.1} parent=1 // pred_check
      _
    $region27: #{_generate_impl.1} parent=1 // pred_check_branch
      %49 = sbr.rel (0) target = $region29
    $region28: #{_generate_impl.1} parent=1 // pred_region
      %s51 = ssub.s32 1536, 1536
      %52 = vsyncadd [#allocation6], %s51
      %s53 = sshll.u32 [#allocation7], 4
      %s54 = int_to_ptr.vmem [resolvable:$true] %s53
      %59 = dma.hbm_to_vmem [thread:$0]  %s6, 1536, %s54, [#allocation6], 384, 384, 24
    $region29: #{_generate_impl.1} parent=1 // pred_fallthru
      _
    // Predicated region
    $region30: #{_generate_impl.1} parent=1 // pred_check
      _
    $region31: #{_generate_impl.1} parent=1 // pred_check_branch
      %61 = sbr.rel (0) target = $region33
    $region32: #{_generate_impl.1} parent=1 // pred_region
      _
    $region33: #{_generate_impl.1} parent=1 // pred_fallthru
      _
    // Predicated region
    $region34: #{_generate_impl.1} parent=1 // pred_check
      _
    $region35: #{_generate_impl.1} parent=1 // pred_check_branch
      %63 = sbr.rel (0) target = $region37
    $region36: #{_generate_impl.1} parent=1 // pred_region
      %64 = dma.done [#allocation4], 256
    $region37: #{_generate_impl.1} parent=1 // pred_fallthru
      _
    // Predicated region
    $region38: #{_generate_impl.1} parent=1 // pred_check
      _
    $region39: #{_generate_impl.1} parent=1 // pred_check_branch
      %66 = sbr.rel (0) target = $region41
    $region40: #{_generate_impl.1} parent=1 // pred_region
      %67 = dma.done [#allocation6], 512
    $region41: #{_generate_impl.1} parent=1 // pred_fallthru
      _
    // Predicated region
    $region42: #{_generate_impl.1} parent=1 // pred_check
      _
    $region43: #{_generate_impl.1} parent=1 // pred_check_branch
      %69 = sbr.rel (0) target = $region45
    $region44: #{_generate_impl.1} parent=1 // pred_region
      %70 = dma.done [#allocation6], 1536
    $region45: #{_generate_impl.1} parent=1 // pred_fallthru
      _
    %s71 = sld [smem:[#allocation2]]
    %v72 = vlaneseq
    %v73 = vand.u32 %v72, 127
    %v74 = vstv %s71
    %vm75 = vcmp.eq.s32.totalorder %v73, %v74
    %v76 = vsel %vm75, 1.0, 0.0
    %v77 = vld [vmem:[%s1] sm:$0x7]
    %v78 = vadd.f32 %v77, %v76
    %v79 = vld [vmem:[#allocation3] sm:$0xff]
    %v80 = vld [vmem:[#allocation3 + $0x8] sm:$0x1f]
    %v81 = vld [vmem:[%s3] sm:$0x1]
    %v83 = vlaneseq
    %v84 = vshrl.u32 %v83, 7
    %v85 = vsub.s32 0, %v84
    %v86 = vrot.slane %v81, %v85
    %vm88 = vcmask 105472
    %v90 = vsel %vm88, %v78, 0
    %vm92 = vcmask 1044480
    %v94 = vsel %vm92, %v80, 0
    %96 = vmatprep.subr.mxu0 0.0
    %97 = vmatpush1.msra.mxu0 %v79
    %98 = vmatprep.subr.mxu0 0.0
    %99 = vmatpush1.msra.mxu0 %v94
    %100 = vmatprep.subr.mxu0 0.0
    %101 = vmatpush1.msra.mxu0 0.0
    %102 = vmatprep.subr.mxu0 0.0
    %103 = vmatpush1.msra.mxu0 0.0
    %104 = vmatprep.subr.mxu0 0.0
    %105 = vmatpush1.msra.mxu0 0.0
    %106 = vmatprep.subr.mxu0 0.0
    %107 = vmatpush1.msra.mxu0 0.0
    %108 = vmatprep.subr.mxu0 0.0
    %109 = vmatpush1.msra.mxu0 0.0
    %110 = vmatprep.subr.mxu0 0.0
    %111 = vmatpush1.msra.mxu0 0.0
    %112 = vmatprep.subr.mxu0 0.0
    %113 = vmatpush1.msra.mxu0 0.0
    %114 = vmatprep.subr.mxu0 0.0
    %115 = vmatpush1.msra.mxu0 0.0
    %116 = vmatprep.subr.mxu0 0.0
    %117 = vmatpush1.msra.mxu0 0.0
    %118 = vmatprep.subr.mxu0 0.0
    %119 = vmatpush1.msra.mxu0 0.0
    %120 = vmatprep.subr.mxu0 0.0
    %121 = vmatpush1.msra.mxu0 0.0
    %122 = vmatprep.subr.mxu0 0.0
    %123 = vmatpush1.msra.mxu0 0.0
    %124 = vmatprep.subr.mxu0 0.0
    %125 = vmatpush1.msra.mxu0 0.0
    %126 = vmatprep.subr.mxu0 0.0
    %127 = vmatpush1.msra.mxu0 0.0
    %128 = vmatprep.subr.mxu0 0.0
    %129 = vmatpush1.msra.mxu0 0.0
    %130 = vmatprep.subr.mxu0 0.0
    %131 = vmatpush1.msra.mxu0 0.0
    %132 = vmatprep.subr.mxu0 0.0
    %133 = vmatpush1.msra.mxu0 0.0
    %134 = vmatprep.subr.mxu0 0.0
    %135 = vmatpush1.msra.mxu0 0.0
    %136 = vmatprep.subr.mxu0 0.0
    %137 = vmatpush1.msra.mxu0 0.0
    %138 = vmatprep.subr.mxu0 0.0
    %139 = vmatpush1.msra.mxu0 0.0
    %140 = vmatprep.subr.mxu0 0.0
    %141 = vmatpush1.msra.mxu0 0.0
    %142 = vmatprep.subr.mxu0 0.0
    %143 = vmatpush1.msra.mxu0 0.0
    %144 = vmatprep.subr.mxu0 0.0
    %145 = vmatpush1.msra.mxu0 0.0
    %146 = vmatprep.subr.mxu0 0.0
    %147 = vmatpush1.msra.mxu0 0.0
    %148 = vmatprep.subr.mxu0 0.0
    %149 = vmatpush1.msra.mxu0 0.0
    %150 = vmatprep.subr.mxu0 0.0
    %151 = vmatpush1.msra.mxu0 0.0
    %152 = vmatprep.subr.mxu0 0.0
    %153 = vmatpush1.msra.mxu0 0.0
    %154 = vmatprep.subr.mxu0 0.0
    %155 = vmatpush1.msra.mxu0 0.0
    %156 = vmatprep.subr.mxu0 0.0
    %157 = vmatpush1.msra.mxu0 0.0
    %158 = vmatprep.subr.mxu0 0.0
    %159 = vmatpush1.msra.mxu0 0.0
    %160 = vmatprep.mubr.f32.mxu0 0.0
    %161 = vmatmul.mubr.f32.gmra.mrb[0].mxu0 %v90
    %v162 = vpop.f32.mrb[0].mxu0
    %v163 = vadd.f32 %v86, %v162
    %v164 = vpop.f32.mrb[0].mxu0
    %165 = vdwg.mxu0
    %vm166 = vcmp.ge.f32.partialorder %v163, 0.0
    %v167 = vmul.f32 %v163, 0.01
    %v168 = vsel %vm166, %v163, %v167
    %v169 = vld [vmem:[#allocation5] sm:$0xff]
    %v170 = vld [vmem:[#allocation5 + $0x8] sm:$0xff]
    %v171 = vld [vmem:[#allocation5 + $0x10] sm:$0xff]
    %v172 = vld [vmem:[#allocation5 + $0x18] sm:$0x3]
    %v173 = vld [vmem:[%s5] sm:$0x1]
    %v175 = vlaneseq
    %v176 = vshrl.u32 %v175, 7
    %v177 = vsub.s32 0, %v176
    %v178 = vrot.slane %v173, %v177
    %vm180 = vcmask 211968
    %v182 = vsel %vm180, %v168, 0
    %vm184 = vcmask 1041408
    %v186 = vsel %vm184, %v172, 0
    %188 = vmatprep.subr.mxu0 0.0
    %189 = vmatpush1.msra.mxu0 %v169
    %190 = vmatprep.subr.mxu0 0.0
    %191 = vmatpush1.msra.mxu0 %v170
    %192 = vmatprep.subr.mxu0 0.0
    %193 = vmatpush1.msra.mxu0 %v171
    %194 = vmatprep.subr.mxu0 0.0
    %195 = vmatpush1.msra.mxu0 %v186
    %196 = vmatprep.subr.mxu0 0.0
    %197 = vmatpush1.msra.mxu0 0.0
    %198 = vmatprep.subr.mxu0 0.0
    %199 = vmatpush1.msra.mxu0 0.0
    %200 = vmatprep.subr.mxu0 0.0
    %201 = vmatpush1.msra.mxu0 0.0
    %202 = vmatprep.subr.mxu0 0.0
    %203 = vmatpush1.msra.mxu0 0.0
    %204 = vmatprep.subr.mxu0 0.0
    %205 = vmatpush1.msra.mxu0 0.0
    %206 = vmatprep.subr.mxu0 0.0
    %207 = vmatpush1.msra.mxu0 0.0
    %208 = vmatprep.subr.mxu0 0.0
    %209 = vmatpush1.msra.mxu0 0.0
    %210 = vmatprep.subr.mxu0 0.0
    %211 = vmatpush1.msra.mxu0 0.0
    %212 = vmatprep.subr.mxu0 0.0
    %213 = vmatpush1.msra.mxu0 0.0
    %214 = vmatprep.subr.mxu0 0.0
    %215 = vmatpush1.msra.mxu0 0.0
    %216 = vmatprep.subr.mxu0 0.0
    %217 = vmatpush1.msra.mxu0 0.0
    %218 = vmatprep.subr.mxu0 0.0
    %219 = vmatpush1.msra.mxu0 0.0
    %220 = vmatprep.subr.mxu0 0.0
    %221 = vmatpush1.msra.mxu0 0.0
    %222 = vmatprep.subr.mxu0 0.0
    %223 = vmatpush1.msra.mxu0 0.0
    %224 = vmatprep.subr.mxu0 0.0
    %225 = vmatpush1.msra.mxu0 0.0
    %226 = vmatprep.subr.mxu0 0.0
    %227 = vmatpush1.msra.mxu0 0.0
    %228 = vmatprep.subr.mxu0 0.0
    %229 = vmatpush1.msra.mxu0 0.0
    %230 = vmatprep.subr.mxu0 0.0
    %231 = vmatpush1.msra.mxu0 0.0
    %232 = vmatprep.subr.mxu0 0.0
    %233 = vmatpush1.msra.mxu0 0.0
    %234 = vmatprep.subr.mxu0 0.0
    %235 = vmatpush1.msra.mxu0 0.0
    %236 = vmatprep.subr.mxu0 0.0
    %237 = vmatpush1.msra.mxu0 0.0
    %238 = vmatprep.subr.mxu0 0.0
    %239 = vmatpush1.msra.mxu0 0.0
    %240 = vmatprep.subr.mxu0 0.0
    %241 = vmatpush1.msra.mxu0 0.0
    %242 = vmatprep.subr.mxu0 0.0
    %243 = vmatpush1.msra.mxu0 0.0
    %244 = vmatprep.subr.mxu0 0.0
    %245 = vmatpush1.msra.mxu0 0.0
    %246 = vmatprep.subr.mxu0 0.0
    %247 = vmatpush1.msra.mxu0 0.0
    %248 = vmatprep.subr.mxu0 0.0
    %249 = vmatpush1.msra.mxu0 0.0
    %250 = vmatprep.subr.mxu0 0.0
    %251 = vmatpush1.msra.mxu0 0.0
    %252 = vmatprep.mubr.f32.mxu0 0.0
    %253 = vmatmul.mubr.f32.gmra.mrb[0].mxu0 %v182
    %v254 = vpop.f32.mrb[0].mxu0
    %v255 = vadd.f32 %v178, %v254
    %v256 = vpop.f32.mrb[0].mxu0
    %257 = vdwg.mxu0
    %vm258 = vcmp.ge.f32.partialorder %v255, 0.0
    %v259 = vmul.f32 %v255, 0.01
    %v260 = vsel %vm258, %v255, %v259
    %v261 = vld [vmem:[#allocation7] sm:$0xff]
    %v262 = vld [vmem:[#allocation7 + $0x8] sm:$0xff]
    %v263 = vld [vmem:[#allocation7 + $0x10] sm:$0xff]
    %v264 = vld [vmem:[#allocation7 + $0x18] sm:$0xff]
    %v265 = vld [vmem:[#allocation7 + $0x20] sm:$0xff]
    %v266 = vld [vmem:[#allocation7 + $0x28] sm:$0xff]
    %v267 = vld [vmem:[#allocation7 + $0x30] sm:$0xff]
    %v268 = vld [vmem:[#allocation7 + $0x38] sm:$0xff]
    %v269 = vld [vmem:[#allocation7 + $0x40] sm:$0xff]
    %v270 = vld [vmem:[#allocation7 + $0x48] sm:$0x3]
    %v271 = vld [vmem:[#allocation7 + $0x50] sm:$0x3]
    %v272 = vld [vmem:[#allocation7 + $0x58] sm:$0x3]
    %v273 = vld [vmem:[%s7] sm:$0x7]
    %v275 = vlaneseq
    %v276 = vshrl.u32 %v275, 7
    %v277 = vsub.s32 0, %v276
    %v278 = vrot.slane %v273, %v277
    %v279 = vlaneseq
    %v280 = vshrl.u32 %v279, 7
    %v281 = vsub.s32 1, %v280
    %v282 = vrot.slane %v273, %v281
    %v283 = vlaneseq
    %v284 = vshrl.u32 %v283, 7
    %v285 = vsub.s32 2, %v284
    %v286 = vrot.slane %v273, %v285
    %v291 = vsel %vm180, %v260, 0
    %v294 = vsel %vm184, %v270, 0
    %v297 = vsel %vm184, %v271, 0
    %v300 = vsel %vm184, %v272, 0
    %302 = vmatprep.subr.mxu0 %v262
    %303 = vmatpush1.msra.mxu0 %v261
    %304 = vmatprep.subr.mxu0 %v265
    %305 = vmatpush1.msra.mxu0 %v264
    %306 = vmatprep.subr.mxu0 %v268
    %307 = vmatpush1.msra.mxu0 %v267
    %308 = vmatprep.subr.mxu0 %v297
    %309 = vmatpush1.msra.mxu0 %v294
    %310 = vmatprep.subr.mxu0 0.0
    %311 = vmatpush1.msra.mxu0 0.0
    %312 = vmatprep.subr.mxu0 0.0
    %313 = vmatpush1.msra.mxu0 0.0
    %314 = vmatprep.subr.mxu0 0.0
    %315 = vmatpush1.msra.mxu0 0.0
    %316 = vmatprep.subr.mxu0 0.0
    %317 = vmatpush1.msra.mxu0 0.0
    %318 = vmatprep.subr.mxu0 0.0
    %319 = vmatpush1.msra.mxu0 0.0
    %320 = vmatprep.subr.mxu0 0.0
    %321 = vmatpush1.msra.mxu0 0.0
    %322 = vmatprep.subr.mxu0 0.0
    %323 = vmatpush1.msra.mxu0 0.0
    %324 = vmatprep.subr.mxu0 0.0
    %325 = vmatpush1.msra.mxu0 0.0
    %326 = vmatprep.subr.mxu0 0.0
    %327 = vmatpush1.msra.mxu0 0.0
    %328 = vmatprep.subr.mxu0 0.0
    %329 = vmatpush1.msra.mxu0 0.0
    %330 = vmatprep.subr.mxu0 0.0
    %331 = vmatpush1.msra.mxu0 0.0
    %332 = vmatprep.subr.mxu0 0.0
    %333 = vmatpush1.msra.mxu0 0.0
    %334 = vmatprep.subr.mxu0 0.0
    %335 = vmatpush1.msra.mxu0 0.0
    %336 = vmatprep.subr.mxu0 0.0
    %337 = vmatpush1.msra.mxu0 0.0
    %338 = vmatprep.subr.mxu0 0.0
    %339 = vmatpush1.msra.mxu0 0.0
    %340 = vmatprep.subr.mxu0 0.0
    %341 = vmatpush1.msra.mxu0 0.0
    %342 = vmatprep.subr.mxu0 0.0
    %343 = vmatpush1.msra.mxu0 0.0
    %344 = vmatprep.subr.mxu0 0.0
    %345 = vmatpush1.msra.mxu0 0.0
    %346 = vmatprep.subr.mxu0 0.0
    %347 = vmatpush1.msra.mxu0 0.0
    %348 = vmatprep.subr.mxu0 0.0
    %349 = vmatpush1.msra.mxu0 0.0
    %350 = vmatprep.subr.mxu0 0.0
    %351 = vmatpush1.msra.mxu0 0.0
    %352 = vmatprep.subr.mxu0 0.0
    %353 = vmatpush1.msra.mxu0 0.0
    %354 = vmatprep.subr.mxu0 0.0
    %355 = vmatpush1.msra.mxu0 0.0
    %356 = vmatprep.subr.mxu0 0.0
    %357 = vmatpush1.msra.mxu0 0.0
    %358 = vmatprep.subr.mxu0 0.0
    %359 = vmatpush1.msra.mxu0 0.0
    %360 = vmatprep.subr.mxu0 0.0
    %361 = vmatpush1.msra.mxu0 0.0
    %362 = vmatprep.subr.mxu0 0.0
    %363 = vmatpush1.msra.mxu0 0.0
    %364 = vmatprep.subr.mxu0 0.0
    %365 = vmatpush1.msra.mxu0 0.0
    %366 = vmatprep.mubr.f32.mxu0 0.0
    %367 = vmatmul.mubr.f32.gmra.mrb[0].mxu0 %v291
    %v368 = vpop.f32.mrb[0].mxu0
    %v369 = vadd.f32 %v278, %v368
    %v370 = vpop.f32.mrb[0].mxu0
    %v371 = vadd.f32 %v282, %v370
    %372 = vdwg.mxu0
    %373 = vmatprep.subr.mxu0 0.0
    %374 = vmatpush1.msra.mxu0 %v263
    %375 = vmatprep.subr.mxu0 0.0
    %376 = vmatpush1.msra.mxu0 %v266
    %377 = vmatprep.subr.mxu0 0.0
    %378 = vmatpush1.msra.mxu0 %v269
    %379 = vmatprep.subr.mxu0 0.0
    %380 = vmatpush1.msra.mxu0 %v300
    %381 = vmatprep.subr.mxu0 0.0
    %382 = vmatpush1.msra.mxu0 0.0
    %383 = vmatprep.subr.mxu0 0.0
    %384 = vmatpush1.msra.mxu0 0.0
    %385 = vmatprep.subr.mxu0 0.0
    %386 = vmatpush1.msra.mxu0 0.0
    %387 = vmatprep.subr.mxu0 0.0
    %388 = vmatpush1.msra.mxu0 0.0
    %389 = vmatprep.subr.mxu0 0.0
    %390 = vmatpush1.msra.mxu0 0.0
    %391 = vmatprep.subr.mxu0 0.0
    %392 = vmatpush1.msra.mxu0 0.0
    %393 = vmatprep.subr.mxu0 0.0
    %394 = vmatpush1.msra.mxu0 0.0
    %395 = vmatprep.subr.mxu0 0.0
    %396 = vmatpush1.msra.mxu0 0.0
    %397 = vmatprep.subr.mxu0 0.0
    %398 = vmatpush1.msra.mxu0 0.0
    %399 = vmatprep.subr.mxu0 0.0
    %400 = vmatpush1.msra.mxu0 0.0
    %401 = vmatprep.subr.mxu0 0.0
    %402 = vmatpush1.msra.mxu0 0.0
    %403 = vmatprep.subr.mxu0 0.0
    %404 = vmatpush1.msra.mxu0 0.0
    %405 = vmatprep.subr.mxu0 0.0
    %406 = vmatpush1.msra.mxu0 0.0
    %407 = vmatprep.subr.mxu0 0.0
    %408 = vmatpush1.msra.mxu0 0.0
    %409 = vmatprep.subr.mxu0 0.0
    %410 = vmatpush1.msra.mxu0 0.0
    %411 = vmatprep.subr.mxu0 0.0
    %412 = vmatpush1.msra.mxu0 0.0
    %413 = vmatprep.subr.mxu0 0.0
    %414 = vmatpush1.msra.mxu0 0.0
    %415 = vmatprep.subr.mxu0 0.0
    %416 = vmatpush1.msra.mxu0 0.0
    %417 = vmatprep.subr.mxu0 0.0
    %418 = vmatpush1.msra.mxu0 0.0
    %419 = vmatprep.subr.mxu0 0.0
    %420 = vmatpush1.msra.mxu0 0.0
    %421 = vmatprep.subr.mxu0 0.0
    %422 = vmatpush1.msra.mxu0 0.0
    %423 = vmatprep.subr.mxu0 0.0
    %424 = vmatpush1.msra.mxu0 0.0
    %425 = vmatprep.subr.mxu0 0.0
    %426 = vmatpush1.msra.mxu0 0.0
    %427 = vmatprep.subr.mxu0 0.0
    %428 = vmatpush1.msra.mxu0 0.0
    %429 = vmatprep.subr.mxu0 0.0
    %430 = vmatpush1.msra.mxu0 0.0
    %431 = vmatprep.subr.mxu0 0.0
    %432 = vmatpush1.msra.mxu0 0.0
    %433 = vmatprep.subr.mxu0 0.0
    %434 = vmatpush1.msra.mxu0 0.0
    %435 = vmatprep.subr.mxu0 0.0
    %436 = vmatpush1.msra.mxu0 0.0
    %437 = vmatprep.mubr.f32.mxu0 0.0
    %438 = vmatmul.mubr.f32.gmra.mrb[0].mxu0 %v291
    %v439 = vpop.f32.mrb[0].mxu0
    %v440 = vadd.f32 %v286, %v439
    %v441 = vpop.f32.mrb[0].mxu0
    %442 = vdwg.mxu0
    %vm443 = vcmp.ge.f32.partialorder %v369, 0.0
    %vm444 = vcmp.ge.f32.partialorder %v371, 0.0
    %vm445 = vcmp.ge.f32.partialorder %v440, 0.0
    %v446 = vmul.f32 %v369, 0.01
    %v447 = vmul.f32 %v371, 0.01
    %v448 = vmul.f32 %v440, 0.01
    %v449 = vsel %vm443, %v369, %v446
    %v450 = vsel %vm444, %v371, %v447
    %v451 = vsel %vm445, %v440, %v448
    %v454 = vcombine.low %v449, %v450
    %456 = vst [vmem:[%s8] sm:$0x77] %v454
    %457 = vst [vmem:[%s8 + $0x8] sm:$0x7] %v451
    // Predicated region
    $region46: #{_generate_impl.1} parent=1 // pred_check
      _
    $region47: #{_generate_impl.1} parent=1 // pred_check_branch
      %459 = sbr.rel (0) target = $region49
    $region48: #{_generate_impl.1} parent=1 // pred_region
      _
    $region49: #{_generate_impl.1} parent=1 // pred_fallthru
      _
    // Predicated region
    $region50: #{_generate_impl.1} parent=1 // pred_check
      _
    $region51: #{_generate_impl.1} parent=1 // pred_check_branch
      %461 = sbr.rel (0) target = $region53
    $region52: #{_generate_impl.1} parent=1 // pred_region
      _
    $region53: #{_generate_impl.1} parent=1 // pred_fallthru
      _
    %462 = vsyncpa [#allocation4], 1
    %463 = vsyncpa [#allocation6], 1

</llo_original>
